<compile_context>
chip_gen: v7x
topology: tpu7x:2x2x1
jax: 0.10.0
libtpu: 0.0.40
codegen_flags: <defaults>
</compile_context>

<pallas_src>
import functools

import jax
import jax.numpy as jnp
from jax.experimental import pallas as pl
from jax.experimental.pallas import tpu as pltpu

N_IN, N_HIDDEN, N_OUT = 12, 16, 32
MIN_TB = 2048   # keep per-step pipeline overhead small
MAX_TB = 8192   # keep double-buffered lane-padded staging well inside v7x VMEM

_HP = jax.lax.Precision.HIGHEST  # tiny matmuls; kernel is HBM-bound anyway


def net_kernel(x_ref, w1_ref, b1_ref, w2h_ref, w2x_ref, b2_ref, o_ref):
    x = x_ref[...]                                               # (TB, 12) f32
    # fc1 + relu
    h = jnp.dot(x, w1_ref[...], preferred_element_type=jnp.float32,
                precision=_HP) + b1_ref[...]                     # (TB, 16)
    h = jnp.maximum(h, 0.0)
    # fc2 on cat([h, x], 1)  ==  h @ W2h + x @ W2x + b2
    out = (jnp.dot(h, w2h_ref[...], preferred_element_type=jnp.float32,
                   precision=_HP)
           + jnp.dot(x, w2x_ref[...], preferred_element_type=jnp.float32,
                     precision=_HP)
           + b2_ref[...])                                        # (TB, 32)
    o_ref[...] = out.astype(o_ref.dtype)


def _round_up(x, m):
    return ((x + m - 1) // m) * m


def _choose_tb(batch):
    # Small batches: one tile equal to the full batch dim (exempt from the
    # sublane-divisibility rule, and pipelining buys nothing at this size).
    if batch <= MIN_TB:
        return int(batch)
    # Large batches: aim for ~4 grid steps (pipelining + v7x 2-TC sharding),
    # tile a multiple of 256, clamped to [MIN_TB, MAX_TB].
    tb = _round_up(pl.cdiv(batch, 4), 256)
    return int(min(MAX_TB, max(MIN_TB, tb)))


@functools.partial(jax.jit, static_argnames=("tb",))
def net_forward(x, w1, b1, w2, b2, tb=None):
    """x: (B, 12) f32.  w1: (12,16), b1: (16,), w2: (28,32), b2: (32,)."""
    B = x.shape[0]
    TB = _choose_tb(B) if tb is None else int(tb)

    # Weight re-layout is constant-sized wrapper plumbing (a few KB, one-off).
    w2h = w2[:N_HIDDEN, :]                                       # (16, 32)
    w2x = w2[N_HIDDEN:, :]                                       # (12, 32)
    b1r = b1.reshape(1, N_HIDDEN)
    b2r = b2.reshape(1, N_OUT)

    grid = (pl.cdiv(B, TB),)
    cost = pl.CostEstimate(
        flops=2 * B * (N_IN * N_HIDDEN + (N_HIDDEN + N_IN) * N_OUT),
        transcendentals=0,
        bytes_accessed=4 * (B * (N_IN + N_OUT)
                            + N_IN * N_HIDDEN + (N_HIDDEN + N_IN) * N_OUT
                            + N_HIDDEN + N_OUT),
    )

    return pl.pallas_call(
        net_kernel,
        out_shape=jax.ShapeDtypeStruct((B, N_OUT), jnp.float32),
        grid=grid,
        in_specs=[
            pl.BlockSpec((TB, N_IN), lambda i: (i, 0)),          # x tile (streams)
            pl.BlockSpec((N_IN, N_HIDDEN), lambda i: (0, 0)),    # W1 (resident)
            pl.BlockSpec((1, N_HIDDEN), lambda i: (0, 0)),       # b1
            pl.BlockSpec((N_HIDDEN, N_OUT), lambda i: (0, 0)),   # W2h
            pl.BlockSpec((N_IN, N_OUT), lambda i: (0, 0)),       # W2x
            pl.BlockSpec((1, N_OUT), lambda i: (0, 0)),          # b2
        ],
        out_specs=pl.BlockSpec((TB, N_OUT), lambda i: (i, 0)),   # out tile
        compiler_params=pltpu.CompilerParams(
            dimension_semantics=("parallel",),
            vmem_limit_bytes=48 * 1024 * 1024,
        ),
        cost_estimate=cost,
    )(x, w1, b1r, w2h, w2x, b2r)


def init_params(key):
    """Deterministic parameter init (PyTorch Linear shapes, stored transposed)."""
    k1, k2, k3, k4 = jax.random.split(key, 4)
    lim1 = 1.0 / jnp.sqrt(N_IN)
    w1 = jax.random.uniform(k1, (N_IN, N_HIDDEN), jnp.float32, -lim1, lim1)
    b1 = jax.random.uniform(k2, (N_HIDDEN,), jnp.float32, -lim1, lim1)
    lim2 = 1.0 / jnp.sqrt(N_HIDDEN + N_IN)
    w2 = jax.random.uniform(k3, (N_HIDDEN + N_IN, N_OUT), jnp.float32, -lim2, lim2)
    b2 = jax.random.uniform(k4, (N_OUT,), jnp.float32, -lim2, lim2)
    return w1, b1, w2, b2


def reference_forward(x, w1, b1, w2, b2):
    h = jnp.maximum(jnp.dot(x, w1, precision=_HP) + b1, 0.0)
    hc = jnp.concatenate([h, x], axis=1)
    return jnp.dot(hc, w2, precision=_HP) + b2


if __name__ == "__main__":
    key = jax.random.PRNGKey(0)
    kx, kx2, kp = jax.random.split(key, 3)
    w1, b1, w2, b2 = init_params(kp)

    # Small single-tile check.
    B = 8
    x = jax.random.normal(kx, (B, N_IN), jnp.float32)
    out = jax.block_until_ready(net_forward(x, w1, b1, w2, b2))
    ref = reference_forward(x, w1, b1, w2, b2)
    assert out.shape == (B, N_OUT)
    assert jnp.allclose(out, ref, atol=2e-3, rtol=2e-3), "mismatch vs reference (B=8)"

    # Multi-step grid with a ragged last block (exercises masked boundary tile).
    B2 = 300
    x2 = jax.random.normal(kx2, (B2, N_IN), jnp.float32)
    out2 = jax.block_until_ready(net_forward(x2, w1, b1, w2, b2, tb=128))
    ref2 = reference_forward(x2, w1, b1, w2, b2)
    assert out2.shape == (B2, N_OUT)
    assert jnp.allclose(out2, ref2, atol=2e-3, rtol=2e-3), "mismatch vs reference (B=300)"

    print("KERNEL_OK")
</pallas_src>

<mosaic_0001>
module attributes {stable_mosaic.version = 11 : i64} {
  func.func @net_kernel(%arg0: i32, %arg1: memref<8x12xf32, #tpu.memory_space<vmem>>, %arg2: memref<12x16xf32, #tpu.memory_space<vmem>>, %arg3: memref<1x16xf32, #tpu.memory_space<vmem>>, %arg4: memref<16x32xf32, #tpu.memory_space<vmem>>, %arg5: memref<12x32xf32, #tpu.memory_space<vmem>>, %arg6: memref<1x32xf32, #tpu.memory_space<vmem>>, %arg7: memref<8x32xf32, #tpu.memory_space<vmem>>) attributes {dimension_semantics = [#tpu.dimension_semantics<parallel>], iteration_bounds = array<i64: 1>, scalar_prefetch = 0 : i64, scratch_operands = 0 : i64, tpu.core_type = #tpu.core_type<tc>, window_params = [{transform_indices = @transform_0, window_bounds = array<i64: 8, 12>}, {pipeline_mode = #tpu.pipeline_mode<synchronous>, transform_indices = @transform_1, window_bounds = array<i64: 12, 16>}, {pipeline_mode = #tpu.pipeline_mode<synchronous>, transform_indices = @transform_2, window_bounds = array<i64: 1, 16>}, {pipeline_mode = #tpu.pipeline_mode<synchronous>, transform_indices = @transform_3, window_bounds = array<i64: 16, 32>}, {pipeline_mode = #tpu.pipeline_mode<synchronous>, transform_indices = @transform_4, window_bounds = array<i64: 12, 32>}, {pipeline_mode = #tpu.pipeline_mode<synchronous>, transform_indices = @transform_5, window_bounds = array<i64: 1, 32>}, {transform_indices = @transform_6, window_bounds = array<i64: 8, 32>}]} {
    %c0 = arith.constant 0 : index
    %c0_0 = arith.constant 0 : index
    %0 = vector.load %arg1[%c0, %c0_0] : memref<8x12xf32, #tpu.memory_space<vmem>>, vector<8x12xf32>
    %c0_1 = arith.constant 0 : index
    %c0_2 = arith.constant 0 : index
    %1 = vector.load %arg2[%c0_1, %c0_2] : memref<12x16xf32, #tpu.memory_space<vmem>>, vector<12x16xf32>
    %cst = arith.constant dense<0.000000e+00> : vector<8x16xf32>
    %2 = tpu.matmul %0, %1, %cst {dimension_numbers = #tpu.dot_dimension_numbers<[1], [0], [0], [1], [0, 0, 1, 1], [], []>, precision = #tpu.contract_precision<fp32>} : vector<8x12xf32>, vector<12x16xf32>, vector<8x16xf32> -> vector<8x16xf32>
    %c0_3 = arith.constant 0 : index
    %c0_4 = arith.constant 0 : index
    %3 = vector.load %arg3[%c0_3, %c0_4] : memref<1x16xf32, #tpu.memory_space<vmem>>, vector<1x16xf32>
    %4 = vector.broadcast %3 : vector<1x16xf32> to vector<8x16xf32>
    %5 = arith.addf %2, %4 : vector<8x16xf32>
    %cst_5 = arith.constant 0.000000e+00 : f32
    %6 = vector.broadcast %cst_5 : f32 to vector<8x16xf32>
    %7 = arith.maximumf %5, %6 : vector<8x16xf32>
    %c0_6 = arith.constant 0 : index
    %c0_7 = arith.constant 0 : index
    %8 = vector.load %arg4[%c0_6, %c0_7] : memref<16x32xf32, #tpu.memory_space<vmem>>, vector<16x32xf32>
    %cst_8 = arith.constant dense<0.000000e+00> : vector<8x32xf32>
    %9 = tpu.matmul %7, %8, %cst_8 {dimension_numbers = #tpu.dot_dimension_numbers<[1], [0], [0], [1], [0, 0, 1, 1], [], []>, precision = #tpu.contract_precision<fp32>} : vector<8x16xf32>, vector<16x32xf32>, vector<8x32xf32> -> vector<8x32xf32>
    %c0_9 = arith.constant 0 : index
    %c0_10 = arith.constant 0 : index
    %10 = vector.load %arg5[%c0_9, %c0_10] : memref<12x32xf32, #tpu.memory_space<vmem>>, vector<12x32xf32>
    %cst_11 = arith.constant dense<0.000000e+00> : vector<8x32xf32>
    %11 = tpu.matmul %0, %10, %cst_11 {dimension_numbers = #tpu.dot_dimension_numbers<[1], [0], [0], [1], [0, 0, 1, 1], [], []>, precision = #tpu.contract_precision<fp32>} : vector<8x12xf32>, vector<12x32xf32>, vector<8x32xf32> -> vector<8x32xf32>
    %12 = arith.addf %9, %11 : vector<8x32xf32>
    %c0_12 = arith.constant 0 : index
    %c0_13 = arith.constant 0 : index
    %13 = vector.load %arg6[%c0_12, %c0_13] : memref<1x32xf32, #tpu.memory_space<vmem>>, vector<1x32xf32>
    %14 = vector.broadcast %13 : vector<1x32xf32> to vector<8x32xf32>
    %15 = arith.addf %12, %14 : vector<8x32xf32>
    %c0_14 = arith.constant 0 : index
    %c0_15 = arith.constant 0 : index
    %16 = vector.load %arg7[%c0_14, %c0_15] : memref<8x32xf32, #tpu.memory_space<vmem>>, vector<8x32xf32>
    tpu.vector_store %arg7[%c0_14, %c0_15], %15 {strides = array<i32>} : memref<8x32xf32, #tpu.memory_space<vmem>>, vector<8x32xf32>,
    return
  }
  func.func @transform_0(%arg0: i32) -> (i32, i32) {
    %c0_i32 = arith.constant 0 : i32
    %c0_i32_0 = arith.constant 0 : i32
    return %arg0, %c0_i32 : i32, i32
  }
  func.func @transform_1(%arg0: i32) -> (i32, i32) {
    %c0_i32 = arith.constant 0 : i32
    %c0_i32_0 = arith.constant 0 : i32
    %c0_i32_1 = arith.constant 0 : i32
    return %c0_i32, %c0_i32_0 : i32, i32
  }
  func.func @transform_2(%arg0: i32) -> (i32, i32) {
    %c0_i32 = arith.constant 0 : i32
    %c0_i32_0 = arith.constant 0 : i32
    %c0_i32_1 = arith.constant 0 : i32
    return %c0_i32, %c0_i32_0 : i32, i32
  }
  func.func @transform_3(%arg0: i32) -> (i32, i32) {
    %c0_i32 = arith.constant 0 : i32
    %c0_i32_0 = arith.constant 0 : i32
    %c0_i32_1 = arith.constant 0 : i32
    return %c0_i32, %c0_i32_0 : i32, i32
  }
  func.func @transform_4(%arg0: i32) -> (i32, i32) {
    %c0_i32 = arith.constant 0 : i32
    %c0_i32_0 = arith.constant 0 : i32
    %c0_i32_1 = arith.constant 0 : i32
    return %c0_i32, %c0_i32_0 : i32, i32
  }
  func.func @transform_5(%arg0: i32) -> (i32, i32) {
    %c0_i32 = arith.constant 0 : i32
    %c0_i32_0 = arith.constant 0 : i32
    %c0_i32_1 = arith.constant 0 : i32
    return %c0_i32, %c0_i32_0 : i32, i32
  }
  func.func @transform_6(%arg0: i32) -> (i32, i32) {
    %c0_i32 = arith.constant 0 : i32
    %c0_i32_0 = arith.constant 0 : i32
    return %arg0, %c0_i32 : i32, i32
  }
}

</mosaic_0001>

<llo_original>
// kernel: net_forward.1
$region0: #{net_forward.1}
  #allocation0 [shape = 'u32[]', space=smem, size = 0x4, offset = 0x4, fixed_abs, tag = 'smem constant byte address 0x4 - core index']
  #allocation1 [shape = 'u32[144,128]{1,0:T(1,128)}', space=vmem, size = 0x12000, scoped, tag = 'internal scratch']
  %s0 = inlined_call_operand.vmem [shape: f32[8,12], index: 0, kind: input, shape index: {}]
  %s1 = inlined_call_operand.vmem [shape: f32[12,16], index: 1, kind: input, shape index: {}]
  %s2 = inlined_call_operand.vmem [shape: f32[1,16], index: 2, kind: input, shape index: {}]
  %s3 = inlined_call_operand.vmem [shape: f32[16,32], index: 3, kind: input, shape index: {}]
  %s4 = inlined_call_operand.vmem [shape: f32[12,32], index: 4, kind: input, shape index: {}]
  %s5 = inlined_call_operand.vmem [shape: f32[1,32], index: 5, kind: input, shape index: {}]
  %s6 = inlined_call_operand.hbm [shape: f32[8,32], index: 6, kind: output, shape index: {}]
  %s7 = sld [smem:[#allocation0]]
  $region34: #{net_forward.1} parent=0
    _
  %s9 = ssub.s32 1, %s7
  %s10 = scalar_select 0, %s9, %s7
  $region1: #{net_forward.1} parent=0
    #allocation2 [shape = 'u8[4096]{0}', space=vmem, size = 0x1000, scoped, tag = 'output window, operand 0, single buffered']
    #allocation3 [shape = 's32[1]{0}', space=sflag, size = 0x4, scoped, tag = 'scoped memory for net_forward.1']
    %11 = vsyncpa [#allocation3], 0
    // Predicated region
    $region2: #{net_forward.1} parent=1 // pred_check
      _
    $region3: #{net_forward.1} parent=1 // pred_check_branch
      %13 = sbr.rel (0) target = $region5
    $region4: #{net_forward.1} parent=1 // pred_region
      _
    $region5: #{net_forward.1} parent=1 // pred_fallthru
      _
    // Predicated region
    $region6: #{net_forward.1} parent=1 // pred_check
      _
    $region7: #{net_forward.1} parent=1 // pred_check_branch
      %15 = sbr.rel (0) target = $region9
    $region8: #{net_forward.1} parent=1 // pred_region
      _
    $region9: #{net_forward.1} parent=1 // pred_fallthru
      _
    // Predicated region
    $region10: #{net_forward.1} parent=1 // pred_check
      _
    $region11: #{net_forward.1} parent=1 // pred_check_branch
      %17 = sbr.rel (0) target = $region13
    $region12: #{net_forward.1} parent=1 // pred_region
      _
    $region13: #{net_forward.1} parent=1 // pred_fallthru
      _
    // Predicated region
    $region14: #{net_forward.1} parent=1 // pred_check
      _
    $region15: #{net_forward.1} parent=1 // pred_check_branch
      %19 = sbr.rel (0) target = $region17
    $region16: #{net_forward.1} parent=1 // pred_region
      _
    $region17: #{net_forward.1} parent=1 // pred_fallthru
      _
    // Predicated region
    $region18: #{net_forward.1} parent=1 // pred_check
      _
    $region19: #{net_forward.1} parent=1 // pred_check_branch
      %21 = sbr.rel (0) target = $region21
    $region20: #{net_forward.1} parent=1 // pred_region
      _
    $region21: #{net_forward.1} parent=1 // pred_fallthru
      _
    // Predicated region
    $region22: #{net_forward.1} parent=1 // pred_check
      _
    $region23: #{net_forward.1} parent=1 // pred_check_branch
      %23 = sbr.rel (0) target = $region25
    $region24: #{net_forward.1} parent=1 // pred_region
      _
    $region25: #{net_forward.1} parent=1 // pred_fallthru
      _
    %v24 = vld [vmem:[%s0] sm:$0xff]
    %v25 = vld [vmem:[%s1] sm:$0xff]
    %v26 = vld [vmem:[%s1 + $0x8] sm:$0xf]
    %v27 = vld [vmem:[%s2] sm:$0x1]
    %v29 = vlaneseq
    %v30 = vshrl.u32 %v29, 7
    %v31 = vsub.s32 0, %v30
    %v32 = vrot.slane %v27, %v31
    %vm34 = vcmask 97280
    %v36 = vsel %vm34, %v24, 0
    %vm38 = vcmask 1043456
    %v40 = vsel %vm38, %v26, 0
    %42 = vmatprep.subr.mxu0 0.0
    %v43 = vand.u32 %v25, 4294901760
    %44 = vmatpush1.msra.mxu0 %v43
    %45 = vmatprep.subr.mxu0 0.0
    %v46 = vand.u32 %v40, 4294901760
    %47 = vmatpush1.msra.mxu0 %v46
    %48 = vmatprep.subr.mxu0 0.0
    %49 = vmatpush1.msra.mxu0 0.0
    %50 = vmatprep.subr.mxu0 0.0
    %51 = vmatpush1.msra.mxu0 0.0
    %52 = vmatprep.subr.mxu0 0.0
    %53 = vmatpush1.msra.mxu0 0.0
    %54 = vmatprep.subr.mxu0 0.0
    %55 = vmatpush1.msra.mxu0 0.0
    %56 = vmatprep.subr.mxu0 0.0
    %57 = vmatpush1.msra.mxu0 0.0
    %58 = vmatprep.subr.mxu0 0.0
    %59 = vmatpush1.msra.mxu0 0.0
    %60 = vmatprep.subr.mxu0 0.0
    %61 = vmatpush1.msra.mxu0 0.0
    %62 = vmatprep.subr.mxu0 0.0
    %63 = vmatpush1.msra.mxu0 0.0
    %64 = vmatprep.subr.mxu0 0.0
    %65 = vmatpush1.msra.mxu0 0.0
    %66 = vmatprep.subr.mxu0 0.0
    %67 = vmatpush1.msra.mxu0 0.0
    %68 = vmatprep.subr.mxu0 0.0
    %69 = vmatpush1.msra.mxu0 0.0
    %70 = vmatprep.subr.mxu0 0.0
    %71 = vmatpush1.msra.mxu0 0.0
    %72 = vmatprep.subr.mxu0 0.0
    %73 = vmatpush1.msra.mxu0 0.0
    %74 = vmatprep.subr.mxu0 0.0
    %75 = vmatpush1.msra.mxu0 0.0
    %76 = vmatprep.subr.mxu0 0.0
    %77 = vmatpush1.msra.mxu0 0.0
    %78 = vmatprep.subr.mxu0 0.0
    %79 = vmatpush1.msra.mxu0 0.0
    %80 = vmatprep.subr.mxu0 0.0
    %81 = vmatpush1.msra.mxu0 0.0
    %82 = vmatprep.subr.mxu0 0.0
    %83 = vmatpush1.msra.mxu0 0.0
    %84 = vmatprep.subr.mxu0 0.0
    %85 = vmatpush1.msra.mxu0 0.0
    %86 = vmatprep.subr.mxu0 0.0
    %87 = vmatpush1.msra.mxu0 0.0
    %88 = vmatprep.subr.mxu0 0.0
    %89 = vmatpush1.msra.mxu0 0.0
    %90 = vmatprep.subr.mxu0 0.0
    %91 = vmatpush1.msra.mxu0 0.0
    %92 = vmatprep.subr.mxu0 0.0
    %93 = vmatpush1.msra.mxu0 0.0
    %94 = vmatprep.subr.mxu0 0.0
    %95 = vmatpush1.msra.mxu0 0.0
    %96 = vmatprep.subr.mxu0 0.0
    %97 = vmatpush1.msra.mxu0 0.0
    %98 = vmatprep.subr.mxu0 0.0
    %99 = vmatpush1.msra.mxu0 0.0
    %100 = vmatprep.subr.mxu0 0.0
    %101 = vmatpush1.msra.mxu0 0.0
    %102 = vmatprep.subr.mxu0 0.0
    %103 = vmatpush1.msra.mxu0 0.0
    %104 = vmatprep.subr.mxu0 0.0
    %105 = vmatpush1.msra.mxu0 0.0
    %106 = vmatprep.subr.mxu0 0.0
    %107 = vmatpush1.msra.mxu0 0.0
    %108 = vmatprep.mubr.f32.mxu0 0.0
    %v109 = vand.u32 %v36, 4294901760
    %v110 = vsub.f32 %v36, %v109
    %v111 = vand.u32 %v110, 4294901760
    %v112 = vsub.f32 %v110, %v111
    %v113 = vand.u32 %v112, 4294901760
    %114 = vmatmul.mubr.f32.gmra.mrb[0].mxu0 %v113
    %v115 = vpop.f32.mrb[0].mxu0
    %v116 = vadd.f32 %v32, %v115
    %v117 = vpop.f32.mrb[0].mxu0
    %118 = vdwg.mxu0
    %119 = vmatprep.subr.mxu0 0.0
    %v120 = vand.u32 %v25, 4294901760
    %v121 = vsub.f32 %v25, %v120
    %v122 = vand.u32 %v121, 4294901760
    %v123 = vsub.f32 %v121, %v122
    %v124 = vand.u32 %v123, 4294901760
    %125 = vmatpush1.msra.mxu0 %v124
    %126 = vmatprep.subr.mxu0 0.0
    %v127 = vand.u32 %v40, 4294901760
    %v128 = vsub.f32 %v40, %v127
    %v129 = vand.u32 %v128, 4294901760
    %v130 = vsub.f32 %v128, %v129
    %v131 = vand.u32 %v130, 4294901760
    %132 = vmatpush1.msra.mxu0 %v131
    %133 = vmatprep.subr.mxu0 0.0
    %134 = vmatpush1.msra.mxu0 0.0
    %135 = vmatprep.subr.mxu0 0.0
    %136 = vmatpush1.msra.mxu0 0.0
    %137 = vmatprep.subr.mxu0 0.0
    %138 = vmatpush1.msra.mxu0 0.0
    %139 = vmatprep.subr.mxu0 0.0
    %140 = vmatpush1.msra.mxu0 0.0
    %141 = vmatprep.subr.mxu0 0.0
    %142 = vmatpush1.msra.mxu0 0.0
    %143 = vmatprep.subr.mxu0 0.0
    %144 = vmatpush1.msra.mxu0 0.0
    %145 = vmatprep.subr.mxu0 0.0
    %146 = vmatpush1.msra.mxu0 0.0
    %147 = vmatprep.subr.mxu0 0.0
    %148 = vmatpush1.msra.mxu0 0.0
    %149 = vmatprep.subr.mxu0 0.0
    %150 = vmatpush1.msra.mxu0 0.0
    %151 = vmatprep.subr.mxu0 0.0
    %152 = vmatpush1.msra.mxu0 0.0
    %153 = vmatprep.subr.mxu0 0.0
    %154 = vmatpush1.msra.mxu0 0.0
    %155 = vmatprep.subr.mxu0 0.0
    %156 = vmatpush1.msra.mxu0 0.0
    %157 = vmatprep.subr.mxu0 0.0
    %158 = vmatpush1.msra.mxu0 0.0
    %159 = vmatprep.subr.mxu0 0.0
    %160 = vmatpush1.msra.mxu0 0.0
    %161 = vmatprep.subr.mxu0 0.0
    %162 = vmatpush1.msra.mxu0 0.0
    %163 = vmatprep.subr.mxu0 0.0
    %164 = vmatpush1.msra.mxu0 0.0
    %165 = vmatprep.subr.mxu0 0.0
    %166 = vmatpush1.msra.mxu0 0.0
    %167 = vmatprep.subr.mxu0 0.0
    %168 = vmatpush1.msra.mxu0 0.0
    %169 = vmatprep.subr.mxu0 0.0
    %170 = vmatpush1.msra.mxu0 0.0
    %171 = vmatprep.subr.mxu0 0.0
    %172 = vmatpush1.msra.mxu0 0.0
    %173 = vmatprep.subr.mxu0 0.0
    %174 = vmatpush1.msra.mxu0 0.0
    %175 = vmatprep.subr.mxu0 0.0
    %176 = vmatpush1.msra.mxu0 0.0
    %177 = vmatprep.subr.mxu0 0.0
    %178 = vmatpush1.msra.mxu0 0.0
    %179 = vmatprep.subr.mxu0 0.0
    %180 = vmatpush1.msra.mxu0 0.0
    %181 = vmatprep.subr.mxu0 0.0
    %182 = vmatpush1.msra.mxu0 0.0
    %183 = vmatprep.subr.mxu0 0.0
    %184 = vmatpush1.msra.mxu0 0.0
    %185 = vmatprep.subr.mxu0 0.0
    %186 = vmatpush1.msra.mxu0 0.0
    %187 = vmatprep.subr.mxu0 0.0
    %188 = vmatpush1.msra.mxu0 0.0
    %189 = vmatprep.subr.mxu0 0.0
    %190 = vmatpush1.msra.mxu0 0.0
    %191 = vmatprep.subr.mxu0 0.0
    %192 = vmatpush1.msra.mxu0 0.0
    %193 = vmatprep.mubr.f32.mxu0 0.0
    %v194 = vand.u32 %v36, 4294901760
    %195 = vmatmul.mubr.f32.gmra.mrb[0].mxu0 %v194
    %v196 = vpop.f32.mrb[0].mxu0
    %v197 = vadd.f32 %v116, %v196
    %v198 = vpop.f32.mrb[0].mxu0
    %199 = vdwg.mxu0
    %200 = vmatprep.subr.mxu0 0.0
    %v201 = vand.u32 %v25, 4294901760
    %v202 = vsub.f32 %v25, %v201
    %203 = vmatpush1.msra.mxu0 %v202
    %204 = vmatprep.subr.mxu0 0.0
    %v205 = vand.u32 %v40, 4294901760
    %v206 = vsub.f32 %v40, %v205
    %207 = vmatpush1.msra.mxu0 %v206
    %208 = vmatprep.subr.mxu0 0.0
    %209 = vmatpush1.msra.mxu0 0.0
    %210 = vmatprep.subr.mxu0 0.0
    %211 = vmatpush1.msra.mxu0 0.0
    %212 = vmatprep.subr.mxu0 0.0
    %213 = vmatpush1.msra.mxu0 0.0
    %214 = vmatprep.subr.mxu0 0.0
    %215 = vmatpush1.msra.mxu0 0.0
    %216 = vmatprep.subr.mxu0 0.0
    %217 = vmatpush1.msra.mxu0 0.0
    %218 = vmatprep.subr.mxu0 0.0
    %219 = vmatpush1.msra.mxu0 0.0
    %220 = vmatprep.subr.mxu0 0.0
    %221 = vmatpush1.msra.mxu0 0.0
    %222 = vmatprep.subr.mxu0 0.0
    %223 = vmatpush1.msra.mxu0 0.0
    %224 = vmatprep.subr.mxu0 0.0
    %225 = vmatpush1.msra.mxu0 0.0
    %226 = vmatprep.subr.mxu0 0.0
    %227 = vmatpush1.msra.mxu0 0.0
    %228 = vmatprep.subr.mxu0 0.0
    %229 = vmatpush1.msra.mxu0 0.0
    %230 = vmatprep.subr.mxu0 0.0
    %231 = vmatpush1.msra.mxu0 0.0
    %232 = vmatprep.subr.mxu0 0.0
    %233 = vmatpush1.msra.mxu0 0.0
    %234 = vmatprep.subr.mxu0 0.0
    %235 = vmatpush1.msra.mxu0 0.0
    %236 = vmatprep.subr.mxu0 0.0
    %237 = vmatpush1.msra.mxu0 0.0
    %238 = vmatprep.subr.mxu0 0.0
    %239 = vmatpush1.msra.mxu0 0.0
    %240 = vmatprep.subr.mxu0 0.0
    %241 = vmatpush1.msra.mxu0 0.0
    %242 = vmatprep.subr.mxu0 0.0
    %243 = vmatpush1.msra.mxu0 0.0
    %244 = vmatprep.subr.mxu0 0.0
    %245 = vmatpush1.msra.mxu0 0.0
    %246 = vmatprep.subr.mxu0 0.0
    %247 = vmatpush1.msra.mxu0 0.0
    %248 = vmatprep.subr.mxu0 0.0
    %249 = vmatpush1.msra.mxu0 0.0
    %250 = vmatprep.subr.mxu0 0.0
    %251 = vmatpush1.msra.mxu0 0.0
    %252 = vmatprep.subr.mxu0 0.0
    %253 = vmatpush1.msra.mxu0 0.0
    %254 = vmatprep.subr.mxu0 0.0
    %255 = vmatpush1.msra.mxu0 0.0
    %256 = vmatprep.subr.mxu0 0.0
    %257 = vmatpush1.msra.mxu0 0.0
    %258 = vmatprep.subr.mxu0 0.0
    %259 = vmatpush1.msra.mxu0 0.0
    %260 = vmatprep.subr.mxu0 0.0
    %261 = vmatpush1.msra.mxu0 0.0
    %262 = vmatprep.subr.mxu0 0.0
    %263 = vmatpush1.msra.mxu0 0.0
    %264 = vmatprep.subr.mxu0 0.0
    %265 = vmatpush1.msra.mxu0 0.0
    %266 = vmatprep.subr.mxu0 0.0
    %267 = vmatpush1.msra.mxu0 0.0
    %268 = vmatprep.mubr.f32.mxu0 0.0
    %v269 = vand.u32 %v36, 4294901760
    %v270 = vsub.f32 %v36, %v269
    %271 = vmatmul.mubr.f32.gmra.mrb[0].mxu0 %v270
    %v272 = vpop.f32.mrb[0].mxu0
    %v273 = vadd.f32 %v197, %v272
    %v274 = vpop.f32.mrb[0].mxu0
    %275 = vdwg.mxu0
    %276 = vmatprep.subr.mxu0 0.0
    %v277 = vand.u32 %v25, 4294901760
    %278 = vmatpush1.msra.mxu0 %v277
    %279 = vmatprep.subr.mxu0 0.0
    %v280 = vand.u32 %v40, 4294901760
    %281 = vmatpush1.msra.mxu0 %v280
    %282 = vmatprep.subr.mxu0 0.0
    %283 = vmatpush1.msra.mxu0 0.0
    %284 = vmatprep.subr.mxu0 0.0
    %285 = vmatpush1.msra.mxu0 0.0
    %286 = vmatprep.subr.mxu0 0.0
    %287 = vmatpush1.msra.mxu0 0.0
    %288 = vmatprep.subr.mxu0 0.0
    %289 = vmatpush1.msra.mxu0 0.0
    %290 = vmatprep.subr.mxu0 0.0
    %291 = vmatpush1.msra.mxu0 0.0
    %292 = vmatprep.subr.mxu0 0.0
    %293 = vmatpush1.msra.mxu0 0.0
    %294 = vmatprep.subr.mxu0 0.0
    %295 = vmatpush1.msra.mxu0 0.0
    %296 = vmatprep.subr.mxu0 0.0
    %297 = vmatpush1.msra.mxu0 0.0
    %298 = vmatprep.subr.mxu0 0.0
    %299 = vmatpush1.msra.mxu0 0.0
    %300 = vmatprep.subr.mxu0 0.0
    %301 = vmatpush1.msra.mxu0 0.0
    %302 = vmatprep.subr.mxu0 0.0
    %303 = vmatpush1.msra.mxu0 0.0
    %304 = vmatprep.subr.mxu0 0.0
    %305 = vmatpush1.msra.mxu0 0.0
    %306 = vmatprep.subr.mxu0 0.0
    %307 = vmatpush1.msra.mxu0 0.0
    %308 = vmatprep.subr.mxu0 0.0
    %309 = vmatpush1.msra.mxu0 0.0
    %310 = vmatprep.subr.mxu0 0.0
    %311 = vmatpush1.msra.mxu0 0.0
    %312 = vmatprep.subr.mxu0 0.0
    %313 = vmatpush1.msra.mxu0 0.0
    %314 = vmatprep.subr.mxu0 0.0
    %315 = vmatpush1.msra.mxu0 0.0
    %316 = vmatprep.subr.mxu0 0.0
    %317 = vmatpush1.msra.mxu0 0.0
    %318 = vmatprep.subr.mxu0 0.0
    %319 = vmatpush1.msra.mxu0 0.0
    %320 = vmatprep.subr.mxu0 0.0
    %321 = vmatpush1.msra.mxu0 0.0
    %322 = vmatprep.subr.mxu0 0.0
    %323 = vmatpush1.msra.mxu0 0.0
    %324 = vmatprep.subr.mxu0 0.0
    %325 = vmatpush1.msra.mxu0 0.0
    %326 = vmatprep.subr.mxu0 0.0
    %327 = vmatpush1.msra.mxu0 0.0
    %328 = vmatprep.subr.mxu0 0.0
    %329 = vmatpush1.msra.mxu0 0.0
    %330 = vmatprep.subr.mxu0 0.0
    %331 = vmatpush1.msra.mxu0 0.0
    %332 = vmatprep.subr.mxu0 0.0
    %333 = vmatpush1.msra.mxu0 0.0
    %334 = vmatprep.subr.mxu0 0.0
    %335 = vmatpush1.msra.mxu0 0.0
    %336 = vmatprep.subr.mxu0 0.0
    %337 = vmatpush1.msra.mxu0 0.0
    %338 = vmatprep.subr.mxu0 0.0
    %339 = vmatpush1.msra.mxu0 0.0
    %340 = vmatprep.subr.mxu0 0.0
    %341 = vmatpush1.msra.mxu0 0.0
    %342 = vmatprep.mubr.f32.mxu0 0.0
    %v343 = vand.u32 %v36, 4294901760
    %v344 = vsub.f32 %v36, %v343
    %v345 = vand.u32 %v344, 4294901760
    %346 = vmatmul.mubr.f32.gmra.mrb[0].mxu0 %v345
    %v347 = vpop.f32.mrb[0].mxu0
    %v348 = vadd.f32 %v273, %v347
    %v349 = vpop.f32.mrb[0].mxu0
    %350 = vdwg.mxu0
    %351 = vmatprep.subr.mxu0 0.0
    %v352 = vand.u32 %v25, 4294901760
    %v353 = vsub.f32 %v25, %v352
    %v354 = vand.u32 %v353, 4294901760
    %355 = vmatpush1.msra.mxu0 %v354
    %356 = vmatprep.subr.mxu0 0.0
    %v357 = vand.u32 %v40, 4294901760
    %v358 = vsub.f32 %v40, %v357
    %v359 = vand.u32 %v358, 4294901760
    %360 = vmatpush1.msra.mxu0 %v359
    %361 = vmatprep.subr.mxu0 0.0
    %362 = vmatpush1.msra.mxu0 0.0
    %363 = vmatprep.subr.mxu0 0.0
    %364 = vmatpush1.msra.mxu0 0.0
    %365 = vmatprep.subr.mxu0 0.0
    %366 = vmatpush1.msra.mxu0 0.0
    %367 = vmatprep.subr.mxu0 0.0
    %368 = vmatpush1.msra.mxu0 0.0
    %369 = vmatprep.subr.mxu0 0.0
    %370 = vmatpush1.msra.mxu0 0.0
    %371 = vmatprep.subr.mxu0 0.0
    %372 = vmatpush1.msra.mxu0 0.0
    %373 = vmatprep.subr.mxu0 0.0
    %374 = vmatpush1.msra.mxu0 0.0
    %375 = vmatprep.subr.mxu0 0.0
    %376 = vmatpush1.msra.mxu0 0.0
    %377 = vmatprep.subr.mxu0 0.0
    %378 = vmatpush1.msra.mxu0 0.0
    %379 = vmatprep.subr.mxu0 0.0
    %380 = vmatpush1.msra.mxu0 0.0
    %381 = vmatprep.subr.mxu0 0.0
    %382 = vmatpush1.msra.mxu0 0.0
    %383 = vmatprep.subr.mxu0 0.0
    %384 = vmatpush1.msra.mxu0 0.0
    %385 = vmatprep.subr.mxu0 0.0
    %386 = vmatpush1.msra.mxu0 0.0
    %387 = vmatprep.subr.mxu0 0.0
    %388 = vmatpush1.msra.mxu0 0.0
    %389 = vmatprep.subr.mxu0 0.0
    %390 = vmatpush1.msra.mxu0 0.0
    %391 = vmatprep.subr.mxu0 0.0
    %392 = vmatpush1.msra.mxu0 0.0
    %393 = vmatprep.subr.mxu0 0.0
    %394 = vmatpush1.msra.mxu0 0.0
    %395 = vmatprep.subr.mxu0 0.0
    %396 = vmatpush1.msra.mxu0 0.0
    %397 = vmatprep.subr.mxu0 0.0
    %398 = vmatpush1.msra.mxu0 0.0
    %399 = vmatprep.subr.mxu0 0.0
    %400 = vmatpush1.msra.mxu0 0.0
    %401 = vmatprep.subr.mxu0 0.0
    %402 = vmatpush1.msra.mxu0 0.0
    %403 = vmatprep.subr.mxu0 0.0
    %404 = vmatpush1.msra.mxu0 0.0
    %405 = vmatprep.subr.mxu0 0.0
    %406 = vmatpush1.msra.mxu0 0.0
    %407 = vmatprep.subr.mxu0 0.0
    %408 = vmatpush1.msra.mxu0 0.0
    %409 = vmatprep.subr.mxu0 0.0
    %410 = vmatpush1.msra.mxu0 0.0
    %411 = vmatprep.subr.mxu0 0.0
    %412 = vmatpush1.msra.mxu0 0.0
    %413 = vmatprep.subr.mxu0 0.0
    %414 = vmatpush1.msra.mxu0 0.0
    %415 = vmatprep.subr.mxu0 0.0
    %416 = vmatpush1.msra.mxu0 0.0
    %417 = vmatprep.subr.mxu0 0.0
    %418 = vmatpush1.msra.mxu0 0.0
    %419 = vmatprep.subr.mxu0 0.0
    %420 = vmatpush1.msra.mxu0 0.0
    %421 = vmatprep.mubr.f32.mxu0 0.0
    %v422 = vand.u32 %v36, 4294901760
    %423 = vmatmul.mubr.f32.gmra.mrb[0].mxu0 %v422
    %v424 = vpop.f32.mrb[0].mxu0
    %v425 = vadd.f32 %v348, %v424
    %v426 = vpop.f32.mrb[0].mxu0
    %427 = vdwg.mxu0
    %428 = vmatprep.subr.mxu0 0.0
    %v429 = vand.u32 %v25, 4294901760
    %430 = vmatpush1.msra.mxu0 %v429
    %431 = vmatprep.subr.mxu0 0.0
    %v432 = vand.u32 %v40, 4294901760
    %433 = vmatpush1.msra.mxu0 %v432
    %434 = vmatprep.subr.mxu0 0.0
    %435 = vmatpush1.msra.mxu0 0.0
    %436 = vmatprep.subr.mxu0 0.0
    %437 = vmatpush1.msra.mxu0 0.0
    %438 = vmatprep.subr.mxu0 0.0
    %439 = vmatpush1.msra.mxu0 0.0
    %440 = vmatprep.subr.mxu0 0.0
    %441 = vmatpush1.msra.mxu0 0.0
    %442 = vmatprep.subr.mxu0 0.0
    %443 = vmatpush1.msra.mxu0 0.0
    %444 = vmatprep.subr.mxu0 0.0
    %445 = vmatpush1.msra.mxu0 0.0
    %446 = vmatprep.subr.mxu0 0.0
    %447 = vmatpush1.msra.mxu0 0.0
    %448 = vmatprep.subr.mxu0 0.0
    %449 = vmatpush1.msra.mxu0 0.0
    %450 = vmatprep.subr.mxu0 0.0
    %451 = vmatpush1.msra.mxu0 0.0
    %452 = vmatprep.subr.mxu0 0.0
    %453 = vmatpush1.msra.mxu0 0.0
    %454 = vmatprep.subr.mxu0 0.0
    %455 = vmatpush1.msra.mxu0 0.0
    %456 = vmatprep.subr.mxu0 0.0
    %457 = vmatpush1.msra.mxu0 0.0
    %458 = vmatprep.subr.mxu0 0.0
    %459 = vmatpush1.msra.mxu0 0.0
    %460 = vmatprep.subr.mxu0 0.0
    %461 = vmatpush1.msra.mxu0 0.0
    %462 = vmatprep.subr.mxu0 0.0
    %463 = vmatpush1.msra.mxu0 0.0
    %464 = vmatprep.subr.mxu0 0.0
    %465 = vmatpush1.msra.mxu0 0.0
    %466 = vmatprep.subr.mxu0 0.0
    %467 = vmatpush1.msra.mxu0 0.0
    %468 = vmatprep.subr.mxu0 0.0
    %469 = vmatpush1.msra.mxu0 0.0
    %470 = vmatprep.subr.mxu0 0.0
    %471 = vmatpush1.msra.mxu0 0.0
    %472 = vmatprep.subr.mxu0 0.0
    %473 = vmatpush1.msra.mxu0 0.0
    %474 = vmatprep.subr.mxu0 0.0
    %475 = vmatpush1.msra.mxu0 0.0
    %476 = vmatprep.subr.mxu0 0.0
    %477 = vmatpush1.msra.mxu0 0.0
    %478 = vmatprep.subr.mxu0 0.0
    %479 = vmatpush1.msra.mxu0 0.0
    %480 = vmatprep.subr.mxu0 0.0
    %481 = vmatpush1.msra.mxu0 0.0
    %482 = vmatprep.subr.mxu0 0.0
    %483 = vmatpush1.msra.mxu0 0.0
    %484 = vmatprep.subr.mxu0 0.0
    %485 = vmatpush1.msra.mxu0 0.0
    %486 = vmatprep.subr.mxu0 0.0
    %487 = vmatpush1.msra.mxu0 0.0
    %488 = vmatprep.subr.mxu0 0.0
    %489 = vmatpush1.msra.mxu0 0.0
    %490 = vmatprep.subr.mxu0 0.0
    %491 = vmatpush1.msra.mxu0 0.0
    %492 = vmatprep.subr.mxu0 0.0
    %493 = vmatpush1.msra.mxu0 0.0
    %494 = vmatprep.mubr.f32.mxu0 0.0
    %v495 = vand.u32 %v36, 4294901760
    %496 = vmatmul.mubr.f32.gmra.mrb[0].mxu0 %v495
    %v497 = vpop.f32.mrb[0].mxu0
    %v498 = vadd.f32 %v425, %v497
    %v499 = vpop.f32.mrb[0].mxu0
    %500 = vdwg.mxu0
    %v501 = vmax.f32 %v498, 0.0
    %v502 = vld [vmem:[%s3] sm:$0xff]
    %v503 = vld [vmem:[%s3 + $0x8] sm:$0xff]
    %v504 = vld [vmem:[%s4] sm:$0xff]
    %v505 = vld [vmem:[%s4 + $0x8] sm:$0xf]
    %v507 = vsel %vm38, %v505, 0
    %509 = vmatprep.subr.mxu0 0.0
    %v510 = vand.u32 %v504, 4294901760
    %511 = vmatpush1.msra.mxu0 %v510
    %512 = vmatprep.subr.mxu0 0.0
    %v513 = vand.u32 %v507, 4294901760
    %514 = vmatpush1.msra.mxu0 %v513
    %515 = vmatprep.subr.mxu0 0.0
    %516 = vmatpush1.msra.mxu0 0.0
    %517 = vmatprep.subr.mxu0 0.0
    %518 = vmatpush1.msra.mxu0 0.0
    %519 = vmatprep.subr.mxu0 0.0
    %520 = vmatpush1.msra.mxu0 0.0
    %521 = vmatprep.subr.mxu0 0.0
    %522 = vmatpush1.msra.mxu0 0.0
    %523 = vmatprep.subr.mxu0 0.0
    %524 = vmatpush1.msra.mxu0 0.0
    %525 = vmatprep.subr.mxu0 0.0
    %526 = vmatpush1.msra.mxu0 0.0
    %527 = vmatprep.subr.mxu0 0.0
    %528 = vmatpush1.msra.mxu0 0.0
    %529 = vmatprep.subr.mxu0 0.0
    %530 = vmatpush1.msra.mxu0 0.0
    %531 = vmatprep.subr.mxu0 0.0
    %532 = vmatpush1.msra.mxu0 0.0
    %533 = vmatprep.subr.mxu0 0.0
    %534 = vmatpush1.msra.mxu0 0.0
    %535 = vmatprep.subr.mxu0 0.0
    %536 = vmatpush1.msra.mxu0 0.0
    %537 = vmatprep.subr.mxu0 0.0
    %538 = vmatpush1.msra.mxu0 0.0
    %539 = vmatprep.subr.mxu0 0.0
    %540 = vmatpush1.msra.mxu0 0.0
    %541 = vmatprep.subr.mxu0 0.0
    %542 = vmatpush1.msra.mxu0 0.0
    %543 = vmatprep.subr.mxu0 0.0
    %544 = vmatpush1.msra.mxu0 0.0
    %545 = vmatprep.subr.mxu0 0.0
    %546 = vmatpush1.msra.mxu0 0.0
    %547 = vmatprep.subr.mxu0 0.0
    %548 = vmatpush1.msra.mxu0 0.0
    %549 = vmatprep.subr.mxu0 0.0
    %550 = vmatpush1.msra.mxu0 0.0
    %551 = vmatprep.subr.mxu0 0.0
    %552 = vmatpush1.msra.mxu0 0.0
    %553 = vmatprep.subr.mxu0 0.0
    %554 = vmatpush1.msra.mxu0 0.0
    %555 = vmatprep.subr.mxu0 0.0
    %556 = vmatpush1.msra.mxu0 0.0
    %557 = vmatprep.subr.mxu0 0.0
    %558 = vmatpush1.msra.mxu0 0.0
    %559 = vmatprep.subr.mxu0 0.0
    %560 = vmatpush1.msra.mxu0 0.0
    %561 = vmatprep.subr.mxu0 0.0
    %562 = vmatpush1.msra.mxu0 0.0
    %563 = vmatprep.subr.mxu0 0.0
    %564 = vmatpush1.msra.mxu0 0.0
    %565 = vmatprep.subr.mxu0 0.0
    %566 = vmatpush1.msra.mxu0 0.0
    %567 = vmatprep.subr.mxu0 0.0
    %568 = vmatpush1.msra.mxu0 0.0
    %569 = vmatprep.subr.mxu0 0.0
    %570 = vmatpush1.msra.mxu0 0.0
    %571 = vmatprep.subr.mxu0 0.0
    %572 = vmatpush1.msra.mxu0 0.0
    %573 = vmatprep.subr.mxu0 0.0
    %574 = vmatpush1.msra.mxu0 0.0
    %575 = vmatprep.mubr.f32.mxu0 0.0
    %v576 = vand.u32 %v36, 4294901760
    %v577 = vsub.f32 %v36, %v576
    %v578 = vand.u32 %v577, 4294901760
    %v579 = vsub.f32 %v577, %v578
    %v580 = vand.u32 %v579, 4294901760
    %581 = vmatmul.mubr.f32.gmra.mrb[0].mxu0 %v580
    %v582 = vpop.f32.mrb[0].mxu0
    %v583 = vadd.f32 0.0, %v582
    %v584 = vpop.f32.mrb[0].mxu0
    %585 = vdwg.mxu0
    %586 = vmatprep.subr.mxu0 0.0
    %v587 = vand.u32 %v504, 4294901760
    %v588 = vsub.f32 %v504, %v587
    %v589 = vand.u32 %v588, 4294901760
    %v590 = vsub.f32 %v588, %v589
    %v591 = vand.u32 %v590, 4294901760
    %592 = vmatpush1.msra.mxu0 %v591
    %593 = vmatprep.subr.mxu0 0.0
    %v594 = vand.u32 %v507, 4294901760
    %v595 = vsub.f32 %v507, %v594
    %v596 = vand.u32 %v595, 4294901760
    %v597 = vsub.f32 %v595, %v596
    %v598 = vand.u32 %v597, 4294901760
    %599 = vmatpush1.msra.mxu0 %v598
    %600 = vmatprep.subr.mxu0 0.0
    %601 = vmatpush1.msra.mxu0 0.0
    %602 = vmatprep.subr.mxu0 0.0
    %603 = vmatpush1.msra.mxu0 0.0
    %604 = vmatprep.subr.mxu0 0.0
    %605 = vmatpush1.msra.mxu0 0.0
    %606 = vmatprep.subr.mxu0 0.0
    %607 = vmatpush1.msra.mxu0 0.0
    %608 = vmatprep.subr.mxu0 0.0
    %609 = vmatpush1.msra.mxu0 0.0
    %610 = vmatprep.subr.mxu0 0.0
    %611 = vmatpush1.msra.mxu0 0.0
    %612 = vmatprep.subr.mxu0 0.0
    %613 = vmatpush1.msra.mxu0 0.0
    %614 = vmatprep.subr.mxu0 0.0
    %615 = vmatpush1.msra.mxu0 0.0
    %616 = vmatprep.subr.mxu0 0.0
    %617 = vmatpush1.msra.mxu0 0.0
    %618 = vmatprep.subr.mxu0 0.0
    %619 = vmatpush1.msra.mxu0 0.0
    %620 = vmatprep.subr.mxu0 0.0
    %621 = vmatpush1.msra.mxu0 0.0
    %622 = vmatprep.subr.mxu0 0.0
    %623 = vmatpush1.msra.mxu0 0.0
    %624 = vmatprep.subr.mxu0 0.0
    %625 = vmatpush1.msra.mxu0 0.0
    %626 = vmatprep.subr.mxu0 0.0
    %627 = vmatpush1.msra.mxu0 0.0
    %628 = vmatprep.subr.mxu0 0.0
    %629 = vmatpush1.msra.mxu0 0.0
    %630 = vmatprep.subr.mxu0 0.0
    %631 = vmatpush1.msra.mxu0 0.0
    %632 = vmatprep.subr.mxu0 0.0
    %633 = vmatpush1.msra.mxu0 0.0
    %634 = vmatprep.subr.mxu0 0.0
    %635 = vmatpush1.msra.mxu0 0.0
    %636 = vmatprep.subr.mxu0 0.0
    %637 = vmatpush1.msra.mxu0 0.0
    %638 = vmatprep.subr.mxu0 0.0
    %639 = vmatpush1.msra.mxu0 0.0
    %640 = vmatprep.subr.mxu0 0.0
    %641 = vmatpush1.msra.mxu0 0.0
    %642 = vmatprep.subr.mxu0 0.0
    %643 = vmatpush1.msra.mxu0 0.0
    %644 = vmatprep.subr.mxu0 0.0
    %645 = vmatpush1.msra.mxu0 0.0
    %646 = vmatprep.subr.mxu0 0.0
    %647 = vmatpush1.msra.mxu0 0.0
    %648 = vmatprep.subr.mxu0 0.0
    %649 = vmatpush1.msra.mxu0 0.0
    %650 = vmatprep.subr.mxu0 0.0
    %651 = vmatpush1.msra.mxu0 0.0
    %652 = vmatprep.subr.mxu0 0.0
    %653 = vmatpush1.msra.mxu0 0.0
    %654 = vmatprep.subr.mxu0 0.0
    %655 = vmatpush1.msra.mxu0 0.0
    %656 = vmatprep.subr.mxu0 0.0
    %657 = vmatpush1.msra.mxu0 0.0
    %658 = vmatprep.subr.mxu0 0.0
    %659 = vmatpush1.msra.mxu0 0.0
    %660 = vmatprep.mubr.f32.mxu0 0.0
    %v661 = vand.u32 %v36, 4294901760
    %662 = vmatmul.mubr.f32.gmra.mrb[0].mxu0 %v661
    %v663 = vpop.f32.mrb[0].mxu0
    %v664 = vadd.f32 %v583, %v663
    %v665 = vpop.f32.mrb[0].mxu0
    %666 = vdwg.mxu0
    %667 = vmatprep.subr.mxu0 0.0
    %v668 = vand.u32 %v504, 4294901760
    %v669 = vsub.f32 %v504, %v668
    %670 = vmatpush1.msra.mxu0 %v669
    %671 = vmatprep.subr.mxu0 0.0
    %v672 = vand.u32 %v507, 4294901760
    %v673 = vsub.f32 %v507, %v672
    %674 = vmatpush1.msra.mxu0 %v673
    %675 = vmatprep.subr.mxu0 0.0
    %676 = vmatpush1.msra.mxu0 0.0
    %677 = vmatprep.subr.mxu0 0.0
    %678 = vmatpush1.msra.mxu0 0.0
    %679 = vmatprep.subr.mxu0 0.0
    %680 = vmatpush1.msra.mxu0 0.0
    %681 = vmatprep.subr.mxu0 0.0
    %682 = vmatpush1.msra.mxu0 0.0
    %683 = vmatprep.subr.mxu0 0.0
    %684 = vmatpush1.msra.mxu0 0.0
    %685 = vmatprep.subr.mxu0 0.0
    %686 = vmatpush1.msra.mxu0 0.0
    %687 = vmatprep.subr.mxu0 0.0
    %688 = vmatpush1.msra.mxu0 0.0
    %689 = vmatprep.subr.mxu0 0.0
    %690 = vmatpush1.msra.mxu0 0.0
    %691 = vmatprep.subr.mxu0 0.0
    %692 = vmatpush1.msra.mxu0 0.0
    %693 = vmatprep.subr.mxu0 0.0
    %694 = vmatpush1.msra.mxu0 0.0
    %695 = vmatprep.subr.mxu0 0.0
    %696 = vmatpush1.msra.mxu0 0.0
    %697 = vmatprep.subr.mxu0 0.0
    %698 = vmatpush1.msra.mxu0 0.0
    %699 = vmatprep.subr.mxu0 0.0
    %700 = vmatpush1.msra.mxu0 0.0
    %701 = vmatprep.subr.mxu0 0.0
    %702 = vmatpush1.msra.mxu0 0.0
    %703 = vmatprep.subr.mxu0 0.0
    %704 = vmatpush1.msra.mxu0 0.0
    %705 = vmatprep.subr.mxu0 0.0
    %706 = vmatpush1.msra.mxu0 0.0
    %707 = vmatprep.subr.mxu0 0.0
    %708 = vmatpush1.msra.mxu0 0.0
    %709 = vmatprep.subr.mxu0 0.0
    %710 = vmatpush1.msra.mxu0 0.0
    %711 = vmatprep.subr.mxu0 0.0
    %712 = vmatpush1.msra.mxu0 0.0
    %713 = vmatprep.subr.mxu0 0.0
    %714 = vmatpush1.msra.mxu0 0.0
    %715 = vmatprep.subr.mxu0 0.0
    %716 = vmatpush1.msra.mxu0 0.0
    %717 = vmatprep.subr.mxu0 0.0
    %718 = vmatpush1.msra.mxu0 0.0
    %719 = vmatprep.subr.mxu0 0.0
    %720 = vmatpush1.msra.mxu0 0.0
    %721 = vmatprep.subr.mxu0 0.0
    %722 = vmatpush1.msra.mxu0 0.0
    %723 = vmatprep.subr.mxu0 0.0
    %724 = vmatpush1.msra.mxu0 0.0
    %725 = vmatprep.subr.mxu0 0.0
    %726 = vmatpush1.msra.mxu0 0.0
    %727 = vmatprep.subr.mxu0 0.0
    %728 = vmatpush1.msra.mxu0 0.0
    %729 = vmatprep.subr.mxu0 0.0
    %730 = vmatpush1.msra.mxu0 0.0
    %731 = vmatprep.subr.mxu0 0.0
    %732 = vmatpush1.msra.mxu0 0.0
    %733 = vmatprep.subr.mxu0 0.0
    %734 = vmatpush1.msra.mxu0 0.0
    %735 = vmatprep.mubr.f32.mxu0 0.0
    %v736 = vand.u32 %v36, 4294901760
    %v737 = vsub.f32 %v36, %v736
    %738 = vmatmul.mubr.f32.gmra.mrb[0].mxu0 %v737
    %v739 = vpop.f32.mrb[0].mxu0
    %v740 = vadd.f32 %v664, %v739
    %v741 = vpop.f32.mrb[0].mxu0
    %742 = vdwg.mxu0
    %743 = vmatprep.subr.mxu0 0.0
    %v744 = vand.u32 %v504, 4294901760
    %745 = vmatpush1.msra.mxu0 %v744
    %746 = vmatprep.subr.mxu0 0.0
    %v747 = vand.u32 %v507, 4294901760
    %748 = vmatpush1.msra.mxu0 %v747
    %749 = vmatprep.subr.mxu0 0.0
    %750 = vmatpush1.msra.mxu0 0.0
    %751 = vmatprep.subr.mxu0 0.0
    %752 = vmatpush1.msra.mxu0 0.0
    %753 = vmatprep.subr.mxu0 0.0
    %754 = vmatpush1.msra.mxu0 0.0
    %755 = vmatprep.subr.mxu0 0.0
    %756 = vmatpush1.msra.mxu0 0.0
    %757 = vmatprep.subr.mxu0 0.0
    %758 = vmatpush1.msra.mxu0 0.0
    %759 = vmatprep.subr.mxu0 0.0
    %760 = vmatpush1.msra.mxu0 0.0
    %761 = vmatprep.subr.mxu0 0.0
    %762 = vmatpush1.msra.mxu0 0.0
    %763 = vmatprep.subr.mxu0 0.0
    %764 = vmatpush1.msra.mxu0 0.0
    %765 = vmatprep.subr.mxu0 0.0
    %766 = vmatpush1.msra.mxu0 0.0
    %767 = vmatprep.subr.mxu0 0.0
    %768 = vmatpush1.msra.mxu0 0.0
    %769 = vmatprep.subr.mxu0 0.0
    %770 = vmatpush1.msra.mxu0 0.0
    %771 = vmatprep.subr.mxu0 0.0
    %772 = vmatpush1.msra.mxu0 0.0
    %773 = vmatprep.subr.mxu0 0.0
    %774 = vmatpush1.msra.mxu0 0.0
    %775 = vmatprep.subr.mxu0 0.0
    %776 = vmatpush1.msra.mxu0 0.0
    %777 = vmatprep.subr.mxu0 0.0
    %778 = vmatpush1.msra.mxu0 0.0
    %779 = vmatprep.subr.mxu0 0.0
    %780 = vmatpush1.msra.mxu0 0.0
    %781 = vmatprep.subr.mxu0 0.0
    %782 = vmatpush1.msra.mxu0 0.0
    %783 = vmatprep.subr.mxu0 0.0
    %784 = vmatpush1.msra.mxu0 0.0
    %785 = vmatprep.subr.mxu0 0.0
    %786 = vmatpush1.msra.mxu0 0.0
    %787 = vmatprep.subr.mxu0 0.0
    %788 = vmatpush1.msra.mxu0 0.0
    %789 = vmatprep.subr.mxu0 0.0
    %790 = vmatpush1.msra.mxu0 0.0
    %791 = vmatprep.subr.mxu0 0.0
    %792 = vmatpush1.msra.mxu0 0.0
    %793 = vmatprep.subr.mxu0 0.0
    %794 = vmatpush1.msra.mxu0 0.0
    %795 = vmatprep.subr.mxu0 0.0
    %796 = vmatpush1.msra.mxu0 0.0
    %797 = vmatprep.subr.mxu0 0.0
    %798 = vmatpush1.msra.mxu0 0.0
    %799 = vmatprep.subr.mxu0 0.0
    %800 = vmatpush1.msra.mxu0 0.0
    %801 = vmatprep.subr.mxu0 0.0
    %802 = vmatpush1.msra.mxu0 0.0
    %803 = vmatprep.subr.mxu0 0.0
    %804 = vmatpush1.msra.mxu0 0.0
    %805 = vmatprep.subr.mxu0 0.0
    %806 = vmatpush1.msra.mxu0 0.0
    %807 = vmatprep.subr.mxu0 0.0
    %808 = vmatpush1.msra.mxu0 0.0
    %809 = vmatprep.mubr.f32.mxu0 0.0
    %v810 = vand.u32 %v36, 4294901760
    %v811 = vsub.f32 %v36, %v810
    %v812 = vand.u32 %v811, 4294901760
    %813 = vmatmul.mubr.f32.gmra.mrb[0].mxu0 %v812
    %v814 = vpop.f32.mrb[0].mxu0
    %v815 = vadd.f32 %v740, %v814
    %v816 = vpop.f32.mrb[0].mxu0
    %817 = vdwg.mxu0
    %818 = vmatprep.subr.mxu0 0.0
    %v819 = vand.u32 %v504, 4294901760
    %v820 = vsub.f32 %v504, %v819
    %v821 = vand.u32 %v820, 4294901760
    %822 = vmatpush1.msra.mxu0 %v821
    %823 = vmatprep.subr.mxu0 0.0
    %v824 = vand.u32 %v507, 4294901760
    %v825 = vsub.f32 %v507, %v824
    %v826 = vand.u32 %v825, 4294901760
    %827 = vmatpush1.msra.mxu0 %v826
    %828 = vmatprep.subr.mxu0 0.0
    %829 = vmatpush1.msra.mxu0 0.0
    %830 = vmatprep.subr.mxu0 0.0
    %831 = vmatpush1.msra.mxu0 0.0
    %832 = vmatprep.subr.mxu0 0.0
    %833 = vmatpush1.msra.mxu0 0.0
    %834 = vmatprep.subr.mxu0 0.0
    %835 = vmatpush1.msra.mxu0 0.0
    %836 = vmatprep.subr.mxu0 0.0
    %837 = vmatpush1.msra.mxu0 0.0
    %838 = vmatprep.subr.mxu0 0.0
    %839 = vmatpush1.msra.mxu0 0.0
    %840 = vmatprep.subr.mxu0 0.0
    %841 = vmatpush1.msra.mxu0 0.0
    %842 = vmatprep.subr.mxu0 0.0
    %843 = vmatpush1.msra.mxu0 0.0
    %844 = vmatprep.subr.mxu0 0.0
    %845 = vmatpush1.msra.mxu0 0.0
    %846 = vmatprep.subr.mxu0 0.0
    %847 = vmatpush1.msra.mxu0 0.0
    %848 = vmatprep.subr.mxu0 0.0
    %849 = vmatpush1.msra.mxu0 0.0
    %850 = vmatprep.subr.mxu0 0.0
    %851 = vmatpush1.msra.mxu0 0.0
    %852 = vmatprep.subr.mxu0 0.0
    %853 = vmatpush1.msra.mxu0 0.0
    %854 = vmatprep.subr.mxu0 0.0
    %855 = vmatpush1.msra.mxu0 0.0
    %856 = vmatprep.subr.mxu0 0.0
    %857 = vmatpush1.msra.mxu0 0.0
    %858 = vmatprep.subr.mxu0 0.0
    %859 = vmatpush1.msra.mxu0 0.0
    %860 = vmatprep.subr.mxu0 0.0
    %861 = vmatpush1.msra.mxu0 0.0
    %862 = vmatprep.subr.mxu0 0.0
    %863 = vmatpush1.msra.mxu0 0.0
    %864 = vmatprep.subr.mxu0 0.0
    %865 = vmatpush1.msra.mxu0 0.0
    %866 = vmatprep.subr.mxu0 0.0
    %867 = vmatpush1.msra.mxu0 0.0
    %868 = vmatprep.subr.mxu0 0.0
    %869 = vmatpush1.msra.mxu0 0.0
    %870 = vmatprep.subr.mxu0 0.0
    %871 = vmatpush1.msra.mxu0 0.0
    %872 = vmatprep.subr.mxu0 0.0
    %873 = vmatpush1.msra.mxu0 0.0
    %874 = vmatprep.subr.mxu0 0.0
    %875 = vmatpush1.msra.mxu0 0.0
    %876 = vmatprep.subr.mxu0 0.0
    %877 = vmatpush1.msra.mxu0 0.0
    %878 = vmatprep.subr.mxu0 0.0
    %879 = vmatpush1.msra.mxu0 0.0
    %880 = vmatprep.subr.mxu0 0.0
    %881 = vmatpush1.msra.mxu0 0.0
    %882 = vmatprep.subr.mxu0 0.0
    %883 = vmatpush1.msra.mxu0 0.0
    %884 = vmatprep.subr.mxu0 0.0
    %885 = vmatpush1.msra.mxu0 0.0
    %886 = vmatprep.subr.mxu0 0.0
    %887 = vmatpush1.msra.mxu0 0.0
    %888 = vmatprep.mubr.f32.mxu0 0.0
    %v889 = vand.u32 %v36, 4294901760
    %890 = vmatmul.mubr.f32.gmra.mrb[0].mxu0 %v889
    %v891 = vpop.f32.mrb[0].mxu0
    %v892 = vadd.f32 %v815, %v891
    %v893 = vpop.f32.mrb[0].mxu0
    %894 = vdwg.mxu0
    %895 = vmatprep.subr.mxu0 0.0
    %v896 = vand.u32 %v504, 4294901760
    %897 = vmatpush1.msra.mxu0 %v896
    %898 = vmatprep.subr.mxu0 0.0
    %v899 = vand.u32 %v507, 4294901760
    %900 = vmatpush1.msra.mxu0 %v899
    %901 = vmatprep.subr.mxu0 0.0
    %902 = vmatpush1.msra.mxu0 0.0
    %903 = vmatprep.subr.mxu0 0.0
    %904 = vmatpush1.msra.mxu0 0.0
    %905 = vmatprep.subr.mxu0 0.0
    %906 = vmatpush1.msra.mxu0 0.0
    %907 = vmatprep.subr.mxu0 0.0
    %908 = vmatpush1.msra.mxu0 0.0
    %909 = vmatprep.subr.mxu0 0.0
    %910 = vmatpush1.msra.mxu0 0.0
    %911 = vmatprep.subr.mxu0 0.0
    %912 = vmatpush1.msra.mxu0 0.0
    %913 = vmatprep.subr.mxu0 0.0
    %914 = vmatpush1.msra.mxu0 0.0
    %915 = vmatprep.subr.mxu0 0.0
    %916 = vmatpush1.msra.mxu0 0.0
    %917 = vmatprep.subr.mxu0 0.0
    %918 = vmatpush1.msra.mxu0 0.0
    %919 = vmatprep.subr.mxu0 0.0
    %920 = vmatpush1.msra.mxu0 0.0
    %921 = vmatprep.subr.mxu0 0.0
    %922 = vmatpush1.msra.mxu0 0.0
    %923 = vmatprep.subr.mxu0 0.0
    %924 = vmatpush1.msra.mxu0 0.0
    %925 = vmatprep.subr.mxu0 0.0
    %926 = vmatpush1.msra.mxu0 0.0
    %927 = vmatprep.subr.mxu0 0.0
    %928 = vmatpush1.msra.mxu0 0.0
    %929 = vmatprep.subr.mxu0 0.0
    %930 = vmatpush1.msra.mxu0 0.0
    %931 = vmatprep.subr.mxu0 0.0
    %932 = vmatpush1.msra.mxu0 0.0
    %933 = vmatprep.subr.mxu0 0.0
    %934 = vmatpush1.msra.mxu0 0.0
    %935 = vmatprep.subr.mxu0 0.0
    %936 = vmatpush1.msra.mxu0 0.0
    %937 = vmatprep.subr.mxu0 0.0
    %938 = vmatpush1.msra.mxu0 0.0
    %939 = vmatprep.subr.mxu0 0.0
    %940 = vmatpush1.msra.mxu0 0.0
    %941 = vmatprep.subr.mxu0 0.0
    %942 = vmatpush1.msra.mxu0 0.0
    %943 = vmatprep.subr.mxu0 0.0
    %944 = vmatpush1.msra.mxu0 0.0
    %945 = vmatprep.subr.mxu0 0.0
    %946 = vmatpush1.msra.mxu0 0.0
    %947 = vmatprep.subr.mxu0 0.0
    %948 = vmatpush1.msra.mxu0 0.0
    %949 = vmatprep.subr.mxu0 0.0
    %950 = vmatpush1.msra.mxu0 0.0
    %951 = vmatprep.subr.mxu0 0.0
    %952 = vmatpush1.msra.mxu0 0.0
    %953 = vmatprep.subr.mxu0 0.0
    %954 = vmatpush1.msra.mxu0 0.0
    %955 = vmatprep.subr.mxu0 0.0
    %956 = vmatpush1.msra.mxu0 0.0
    %957 = vmatprep.subr.mxu0 0.0
    %958 = vmatpush1.msra.mxu0 0.0
    %959 = vmatprep.subr.mxu0 0.0
    %960 = vmatpush1.msra.mxu0 0.0
    %961 = vmatprep.mubr.f32.mxu0 0.0
    %v962 = vand.u32 %v36, 4294901760
    %963 = vmatmul.mubr.f32.gmra.mrb[0].mxu0 %v962
    %v964 = vpop.f32.mrb[0].mxu0
    %v965 = vadd.f32 %v892, %v964
    %v966 = vpop.f32.mrb[0].mxu0
    %967 = vdwg.mxu0
    %vm968 = vcmask 130048
    %v970 = vsel %vm968, %v501, 0
    %972 = vmatprep.subr.mxu0 0.0
    %v973 = vand.u32 %v502, 4294901760
    %974 = vmatpush1.msra.mxu0 %v973
    %975 = vmatprep.subr.mxu0 0.0
    %v976 = vand.u32 %v503, 4294901760
    %977 = vmatpush1.msra.mxu0 %v976
    %978 = vmatprep.subr.mxu0 0.0
    %979 = vmatpush1.msra.mxu0 0.0
    %980 = vmatprep.subr.mxu0 0.0
    %981 = vmatpush1.msra.mxu0 0.0
    %982 = vmatprep.subr.mxu0 0.0
    %983 = vmatpush1.msra.mxu0 0.0
    %984 = vmatprep.subr.mxu0 0.0
    %985 = vmatpush1.msra.mxu0 0.0
    %986 = vmatprep.subr.mxu0 0.0
    %987 = vmatpush1.msra.mxu0 0.0
    %988 = vmatprep.subr.mxu0 0.0
    %989 = vmatpush1.msra.mxu0 0.0
    %990 = vmatprep.subr.mxu0 0.0
    %991 = vmatpush1.msra.mxu0 0.0
    %992 = vmatprep.subr.mxu0 0.0
    %993 = vmatpush1.msra.mxu0 0.0
    %994 = vmatprep.subr.mxu0 0.0
    %995 = vmatpush1.msra.mxu0 0.0
    %996 = vmatprep.subr.mxu0 0.0
    %997 = vmatpush1.msra.mxu0 0.0
    %998 = vmatprep.subr.mxu0 0.0
    %999 = vmatpush1.msra.mxu0 0.0
    %1000 = vmatprep.subr.mxu0 0.0
    %1001 = vmatpush1.msra.mxu0 0.0
    %1002 = vmatprep.subr.mxu0 0.0
    %1003 = vmatpush1.msra.mxu0 0.0
    %1004 = vmatprep.subr.mxu0 0.0
    %1005 = vmatpush1.msra.mxu0 0.0
    %1006 = vmatprep.subr.mxu0 0.0
    %1007 = vmatpush1.msra.mxu0 0.0
    %1008 = vmatprep.subr.mxu0 0.0
    %1009 = vmatpush1.msra.mxu0 0.0
    %1010 = vmatprep.subr.mxu0 0.0
    %1011 = vmatpush1.msra.mxu0 0.0
    %1012 = vmatprep.subr.mxu0 0.0
    %1013 = vmatpush1.msra.mxu0 0.0
    %1014 = vmatprep.subr.mxu0 0.0
    %1015 = vmatpush1.msra.mxu0 0.0
    %1016 = vmatprep.subr.mxu0 0.0
    %1017 = vmatpush1.msra.mxu0 0.0
    %1018 = vmatprep.subr.mxu0 0.0
    %1019 = vmatpush1.msra.mxu0 0.0
    %1020 = vmatprep.subr.mxu0 0.0
    %1021 = vmatpush1.msra.mxu0 0.0
    %1022 = vmatprep.subr.mxu0 0.0
    %1023 = vmatpush1.msra.mxu0 0.0
    %1024 = vmatprep.subr.mxu0 0.0
    %1025 = vmatpush1.msra.mxu0 0.0
    %1026 = vmatprep.subr.mxu0 0.0
    %1027 = vmatpush1.msra.mxu0 0.0
    %1028 = vmatprep.subr.mxu0 0.0
    %1029 = vmatpush1.msra.mxu0 0.0
    %1030 = vmatprep.subr.mxu0 0.0
    %1031 = vmatpush1.msra.mxu0 0.0
    %1032 = vmatprep.subr.mxu0 0.0
    %1033 = vmatpush1.msra.mxu0 0.0
    %1034 = vmatprep.subr.mxu0 0.0
    %1035 = vmatpush1.msra.mxu0 0.0
    %1036 = vmatprep.subr.mxu0 0.0
    %1037 = vmatpush1.msra.mxu0 0.0
    %1038 = vmatprep.mubr.f32.mxu0 0.0
    %v1039 = vand.u32 %v970, 4294901760
    %v1040 = vsub.f32 %v970, %v1039
    %v1041 = vand.u32 %v1040, 4294901760
    %v1042 = vsub.f32 %v1040, %v1041
    %v1043 = vand.u32 %v1042, 4294901760
    %1044 = vmatmul.mubr.f32.gmra.mrb[0].mxu0 %v1043
    %v1045 = vpop.f32.mrb[0].mxu0
    %v1046 = vadd.f32 %v965, %v1045
    %v1047 = vpop.f32.mrb[0].mxu0
    %1048 = vdwg.mxu0
    %1049 = vmatprep.subr.mxu0 0.0
    %v1050 = vand.u32 %v502, 4294901760
    %v1051 = vsub.f32 %v502, %v1050
    %v1052 = vand.u32 %v1051, 4294901760
    %v1053 = vsub.f32 %v1051, %v1052
    %v1054 = vand.u32 %v1053, 4294901760
    %1055 = vmatpush1.msra.mxu0 %v1054
    %1056 = vmatprep.subr.mxu0 0.0
    %v1057 = vand.u32 %v503, 4294901760
    %v1058 = vsub.f32 %v503, %v1057
    %v1059 = vand.u32 %v1058, 4294901760
    %v1060 = vsub.f32 %v1058, %v1059
    %v1061 = vand.u32 %v1060, 4294901760
    %1062 = vmatpush1.msra.mxu0 %v1061
    %1063 = vmatprep.subr.mxu0 0.0
    %1064 = vmatpush1.msra.mxu0 0.0
    %1065 = vmatprep.subr.mxu0 0.0
    %1066 = vmatpush1.msra.mxu0 0.0
    %1067 = vmatprep.subr.mxu0 0.0
    %1068 = vmatpush1.msra.mxu0 0.0
    %1069 = vmatprep.subr.mxu0 0.0
    %1070 = vmatpush1.msra.mxu0 0.0
    %1071 = vmatprep.subr.mxu0 0.0
    %1072 = vmatpush1.msra.mxu0 0.0
    %1073 = vmatprep.subr.mxu0 0.0
    %1074 = vmatpush1.msra.mxu0 0.0
    %1075 = vmatprep.subr.mxu0 0.0
    %1076 = vmatpush1.msra.mxu0 0.0
    %1077 = vmatprep.subr.mxu0 0.0
    %1078 = vmatpush1.msra.mxu0 0.0
    %1079 = vmatprep.subr.mxu0 0.0
    %1080 = vmatpush1.msra.mxu0 0.0
    %1081 = vmatprep.subr.mxu0 0.0
    %1082 = vmatpush1.msra.mxu0 0.0
    %1083 = vmatprep.subr.mxu0 0.0
    %1084 = vmatpush1.msra.mxu0 0.0
    %1085 = vmatprep.subr.mxu0 0.0
    %1086 = vmatpush1.msra.mxu0 0.0
    %1087 = vmatprep.subr.mxu0 0.0
    %1088 = vmatpush1.msra.mxu0 0.0
    %1089 = vmatprep.subr.mxu0 0.0
    %1090 = vmatpush1.msra.mxu0 0.0
    %1091 = vmatprep.subr.mxu0 0.0
    %1092 = vmatpush1.msra.mxu0 0.0
    %1093 = vmatprep.subr.mxu0 0.0
    %1094 = vmatpush1.msra.mxu0 0.0
    %1095 = vmatprep.subr.mxu0 0.0
    %1096 = vmatpush1.msra.mxu0 0.0
    %1097 = vmatprep.subr.mxu0 0.0
    %1098 = vmatpush1.msra.mxu0 0.0
    %1099 = vmatprep.subr.mxu0 0.0
    %1100 = vmatpush1.msra.mxu0 0.0
    %1101 = vmatprep.subr.mxu0 0.0
    %1102 = vmatpush1.msra.mxu0 0.0
    %1103 = vmatprep.subr.mxu0 0.0
    %1104 = vmatpush1.msra.mxu0 0.0
    %1105 = vmatprep.subr.mxu0 0.0
    %1106 = vmatpush1.msra.mxu0 0.0
    %1107 = vmatprep.subr.mxu0 0.0
    %1108 = vmatpush1.msra.mxu0 0.0
    %1109 = vmatprep.subr.mxu0 0.0
    %1110 = vmatpush1.msra.mxu0 0.0
    %1111 = vmatprep.subr.mxu0 0.0
    %1112 = vmatpush1.msra.mxu0 0.0
    %1113 = vmatprep.subr.mxu0 0.0
    %1114 = vmatpush1.msra.mxu0 0.0
    %1115 = vmatprep.subr.mxu0 0.0
    %1116 = vmatpush1.msra.mxu0 0.0
    %1117 = vmatprep.subr.mxu0 0.0
    %1118 = vmatpush1.msra.mxu0 0.0
    %1119 = vmatprep.subr.mxu0 0.0
    %1120 = vmatpush1.msra.mxu0 0.0
    %1121 = vmatprep.subr.mxu0 0.0
    %1122 = vmatpush1.msra.mxu0 0.0
    %1123 = vmatprep.mubr.f32.mxu0 0.0
    %v1124 = vand.u32 %v970, 4294901760
    %1125 = vmatmul.mubr.f32.gmra.mrb[0].mxu0 %v1124
    %v1126 = vpop.f32.mrb[0].mxu0
    %v1127 = vadd.f32 %v1046, %v1126
    %v1128 = vpop.f32.mrb[0].mxu0
    %1129 = vdwg.mxu0
    %1130 = vmatprep.subr.mxu0 0.0
    %v1131 = vand.u32 %v502, 4294901760
    %v1132 = vsub.f32 %v502, %v1131
    %1133 = vmatpush1.msra.mxu0 %v1132
    %1134 = vmatprep.subr.mxu0 0.0
    %v1135 = vand.u32 %v503, 4294901760
    %v1136 = vsub.f32 %v503, %v1135
    %1137 = vmatpush1.msra.mxu0 %v1136
    %1138 = vmatprep.subr.mxu0 0.0
    %1139 = vmatpush1.msra.mxu0 0.0
    %1140 = vmatprep.subr.mxu0 0.0
    %1141 = vmatpush1.msra.mxu0 0.0
    %1142 = vmatprep.subr.mxu0 0.0
    %1143 = vmatpush1.msra.mxu0 0.0
    %1144 = vmatprep.subr.mxu0 0.0
    %1145 = vmatpush1.msra.mxu0 0.0
    %1146 = vmatprep.subr.mxu0 0.0
    %1147 = vmatpush1.msra.mxu0 0.0
    %1148 = vmatprep.subr.mxu0 0.0
    %1149 = vmatpush1.msra.mxu0 0.0
    %1150 = vmatprep.subr.mxu0 0.0
    %1151 = vmatpush1.msra.mxu0 0.0
    %1152 = vmatprep.subr.mxu0 0.0
    %1153 = vmatpush1.msra.mxu0 0.0
    %1154 = vmatprep.subr.mxu0 0.0
    %1155 = vmatpush1.msra.mxu0 0.0
    %1156 = vmatprep.subr.mxu0 0.0
    %1157 = vmatpush1.msra.mxu0 0.0
    %1158 = vmatprep.subr.mxu0 0.0
    %1159 = vmatpush1.msra.mxu0 0.0
    %1160 = vmatprep.subr.mxu0 0.0
    %1161 = vmatpush1.msra.mxu0 0.0
    %1162 = vmatprep.subr.mxu0 0.0
    %1163 = vmatpush1.msra.mxu0 0.0
    %1164 = vmatprep.subr.mxu0 0.0
    %1165 = vmatpush1.msra.mxu0 0.0
    %1166 = vmatprep.subr.mxu0 0.0
    %1167 = vmatpush1.msra.mxu0 0.0
    %1168 = vmatprep.subr.mxu0 0.0
    %1169 = vmatpush1.msra.mxu0 0.0
    %1170 = vmatprep.subr.mxu0 0.0
    %1171 = vmatpush1.msra.mxu0 0.0
    %1172 = vmatprep.subr.mxu0 0.0
    %1173 = vmatpush1.msra.mxu0 0.0
    %1174 = vmatprep.subr.mxu0 0.0
    %1175 = vmatpush1.msra.mxu0 0.0
    %1176 = vmatprep.subr.mxu0 0.0
    %1177 = vmatpush1.msra.mxu0 0.0
    %1178 = vmatprep.subr.mxu0 0.0
    %1179 = vmatpush1.msra.mxu0 0.0
    %1180 = vmatprep.subr.mxu0 0.0
    %1181 = vmatpush1.msra.mxu0 0.0
    %1182 = vmatprep.subr.mxu0 0.0
    %1183 = vmatpush1.msra.mxu0 0.0
    %1184 = vmatprep.subr.mxu0 0.0
    %1185 = vmatpush1.msra.mxu0 0.0
    %1186 = vmatprep.subr.mxu0 0.0
    %1187 = vmatpush1.msra.mxu0 0.0
    %1188 = vmatprep.subr.mxu0 0.0
    %1189 = vmatpush1.msra.mxu0 0.0
    %1190 = vmatprep.subr.mxu0 0.0
    %1191 = vmatpush1.msra.mxu0 0.0
    %1192 = vmatprep.subr.mxu0 0.0
    %1193 = vmatpush1.msra.mxu0 0.0
    %1194 = vmatprep.subr.mxu0 0.0
    %1195 = vmatpush1.msra.mxu0 0.0
    %1196 = vmatprep.subr.mxu0 0.0
    %1197 = vmatpush1.msra.mxu0 0.0
    %1198 = vmatprep.mubr.f32.mxu0 0.0
    %v1199 = vand.u32 %v970, 4294901760
    %v1200 = vsub.f32 %v970, %v1199
    %1201 = vmatmul.mubr.f32.gmra.mrb[0].mxu0 %v1200
    %v1202 = vpop.f32.mrb[0].mxu0
    %v1203 = vadd.f32 %v1127, %v1202
    %v1204 = vpop.f32.mrb[0].mxu0
    %1205 = vdwg.mxu0
    %1206 = vmatprep.subr.mxu0 0.0
    %v1207 = vand.u32 %v502, 4294901760
    %1208 = vmatpush1.msra.mxu0 %v1207
    %1209 = vmatprep.subr.mxu0 0.0
    %v1210 = vand.u32 %v503, 4294901760
    %1211 = vmatpush1.msra.mxu0 %v1210
    %1212 = vmatprep.subr.mxu0 0.0
    %1213 = vmatpush1.msra.mxu0 0.0
    %1214 = vmatprep.subr.mxu0 0.0
    %1215 = vmatpush1.msra.mxu0 0.0
    %1216 = vmatprep.subr.mxu0 0.0
    %1217 = vmatpush1.msra.mxu0 0.0
    %1218 = vmatprep.subr.mxu0 0.0
    %1219 = vmatpush1.msra.mxu0 0.0
    %1220 = vmatprep.subr.mxu0 0.0
    %1221 = vmatpush1.msra.mxu0 0.0
    %1222 = vmatprep.subr.mxu0 0.0
    %1223 = vmatpush1.msra.mxu0 0.0
    %1224 = vmatprep.subr.mxu0 0.0
    %1225 = vmatpush1.msra.mxu0 0.0
    %1226 = vmatprep.subr.mxu0 0.0
    %1227 = vmatpush1.msra.mxu0 0.0
    %1228 = vmatprep.subr.mxu0 0.0
    %1229 = vmatpush1.msra.mxu0 0.0
    %1230 = vmatprep.subr.mxu0 0.0
    %1231 = vmatpush1.msra.mxu0 0.0
    %1232 = vmatprep.subr.mxu0 0.0
    %1233 = vmatpush1.msra.mxu0 0.0
    %1234 = vmatprep.subr.mxu0 0.0
    %1235 = vmatpush1.msra.mxu0 0.0
    %1236 = vmatprep.subr.mxu0 0.0
    %1237 = vmatpush1.msra.mxu0 0.0
    %1238 = vmatprep.subr.mxu0 0.0
    %1239 = vmatpush1.msra.mxu0 0.0
    %1240 = vmatprep.subr.mxu0 0.0
    %1241 = vmatpush1.msra.mxu0 0.0
    %1242 = vmatprep.subr.mxu0 0.0
    %1243 = vmatpush1.msra.mxu0 0.0
    %1244 = vmatprep.subr.mxu0 0.0
    %1245 = vmatpush1.msra.mxu0 0.0
    %1246 = vmatprep.subr.mxu0 0.0
    %1247 = vmatpush1.msra.mxu0 0.0
    %1248 = vmatprep.subr.mxu0 0.0
    %1249 = vmatpush1.msra.mxu0 0.0
    %1250 = vmatprep.subr.mxu0 0.0
    %1251 = vmatpush1.msra.mxu0 0.0
    %1252 = vmatprep.subr.mxu0 0.0
    %1253 = vmatpush1.msra.mxu0 0.0
    %1254 = vmatprep.subr.mxu0 0.0
    %1255 = vmatpush1.msra.mxu0 0.0
    %1256 = vmatprep.subr.mxu0 0.0
    %1257 = vmatpush1.msra.mxu0 0.0
    %1258 = vmatprep.subr.mxu0 0.0
    %1259 = vmatpush1.msra.mxu0 0.0
    %1260 = vmatprep.subr.mxu0 0.0
    %1261 = vmatpush1.msra.mxu0 0.0
    %1262 = vmatprep.subr.mxu0 0.0
    %1263 = vmatpush1.msra.mxu0 0.0
    %1264 = vmatprep.subr.mxu0 0.0
    %1265 = vmatpush1.msra.mxu0 0.0
    %1266 = vmatprep.subr.mxu0 0.0
    %1267 = vmatpush1.msra.mxu0 0.0
    %1268 = vmatprep.subr.mxu0 0.0
    %1269 = vmatpush1.msra.mxu0 0.0
    %1270 = vmatprep.subr.mxu0 0.0
    %1271 = vmatpush1.msra.mxu0 0.0
    %1272 = vmatprep.mubr.f32.mxu0 0.0
    %v1273 = vand.u32 %v970, 4294901760
    %v1274 = vsub.f32 %v970, %v1273
    %v1275 = vand.u32 %v1274, 4294901760
    %1276 = vmatmul.mubr.f32.gmra.mrb[0].mxu0 %v1275
    %v1277 = vpop.f32.mrb[0].mxu0
    %v1278 = vadd.f32 %v1203, %v1277
    %v1279 = vpop.f32.mrb[0].mxu0
    %1280 = vdwg.mxu0
    %1281 = vmatprep.subr.mxu0 0.0
    %v1282 = vand.u32 %v502, 4294901760
    %v1283 = vsub.f32 %v502, %v1282
    %v1284 = vand.u32 %v1283, 4294901760
    %1285 = vmatpush1.msra.mxu0 %v1284
    %1286 = vmatprep.subr.mxu0 0.0
    %v1287 = vand.u32 %v503, 4294901760
    %v1288 = vsub.f32 %v503, %v1287
    %v1289 = vand.u32 %v1288, 4294901760
    %1290 = vmatpush1.msra.mxu0 %v1289
    %1291 = vmatprep.subr.mxu0 0.0
    %1292 = vmatpush1.msra.mxu0 0.0
    %1293 = vmatprep.subr.mxu0 0.0
    %1294 = vmatpush1.msra.mxu0 0.0
    %1295 = vmatprep.subr.mxu0 0.0
    %1296 = vmatpush1.msra.mxu0 0.0
    %1297 = vmatprep.subr.mxu0 0.0
    %1298 = vmatpush1.msra.mxu0 0.0
    %1299 = vmatprep.subr.mxu0 0.0
    %1300 = vmatpush1.msra.mxu0 0.0
    %1301 = vmatprep.subr.mxu0 0.0
    %1302 = vmatpush1.msra.mxu0 0.0
    %1303 = vmatprep.subr.mxu0 0.0
    %1304 = vmatpush1.msra.mxu0 0.0
    %1305 = vmatprep.subr.mxu0 0.0
    %1306 = vmatpush1.msra.mxu0 0.0
    %1307 = vmatprep.subr.mxu0 0.0
    %1308 = vmatpush1.msra.mxu0 0.0
    %1309 = vmatprep.subr.mxu0 0.0
    %1310 = vmatpush1.msra.mxu0 0.0
    %1311 = vmatprep.subr.mxu0 0.0
    %1312 = vmatpush1.msra.mxu0 0.0
    %1313 = vmatprep.subr.mxu0 0.0
    %1314 = vmatpush1.msra.mxu0 0.0
    %1315 = vmatprep.subr.mxu0 0.0
    %1316 = vmatpush1.msra.mxu0 0.0
    %1317 = vmatprep.subr.mxu0 0.0
    %1318 = vmatpush1.msra.mxu0 0.0
    %1319 = vmatprep.subr.mxu0 0.0
    %1320 = vmatpush1.msra.mxu0 0.0
    %1321 = vmatprep.subr.mxu0 0.0
    %1322 = vmatpush1.msra.mxu0 0.0
    %1323 = vmatprep.subr.mxu0 0.0
    %1324 = vmatpush1.msra.mxu0 0.0
    %1325 = vmatprep.subr.mxu0 0.0
    %1326 = vmatpush1.msra.mxu0 0.0
    %1327 = vmatprep.subr.mxu0 0.0
    %1328 = vmatpush1.msra.mxu0 0.0
    %1329 = vmatprep.subr.mxu0 0.0
    %1330 = vmatpush1.msra.mxu0 0.0
    %1331 = vmatprep.subr.mxu0 0.0
    %1332 = vmatpush1.msra.mxu0 0.0
    %1333 = vmatprep.subr.mxu0 0.0
    %1334 = vmatpush1.msra.mxu0 0.0
    %1335 = vmatprep.subr.mxu0 0.0
    %1336 = vmatpush1.msra.mxu0 0.0
    %1337 = vmatprep.subr.mxu0 0.0
    %1338 = vmatpush1.msra.mxu0 0.0
    %1339 = vmatprep.subr.mxu0 0.0
    %1340 = vmatpush1.msra.mxu0 0.0
    %1341 = vmatprep.subr.mxu0 0.0
    %1342 = vmatpush1.msra.mxu0 0.0
    %1343 = vmatprep.subr.mxu0 0.0
    %1344 = vmatpush1.msra.mxu0 0.0
    %1345 = vmatprep.subr.mxu0 0.0
    %1346 = vmatpush1.msra.mxu0 0.0
    %1347 = vmatprep.subr.mxu0 0.0
    %1348 = vmatpush1.msra.mxu0 0.0
    %1349 = vmatprep.subr.mxu0 0.0
    %1350 = vmatpush1.msra.mxu0 0.0
    %1351 = vmatprep.mubr.f32.mxu0 0.0
    %v1352 = vand.u32 %v970, 4294901760
    %1353 = vmatmul.mubr.f32.gmra.mrb[0].mxu0 %v1352
    %v1354 = vpop.f32.mrb[0].mxu0
    %v1355 = vadd.f32 %v1278, %v1354
    %v1356 = vpop.f32.mrb[0].mxu0
    %1357 = vdwg.mxu0
    %1358 = vmatprep.subr.mxu0 0.0
    %v1359 = vand.u32 %v502, 4294901760
    %1360 = vmatpush1.msra.mxu0 %v1359
    %1361 = vmatprep.subr.mxu0 0.0
    %v1362 = vand.u32 %v503, 4294901760
    %1363 = vmatpush1.msra.mxu0 %v1362
    %1364 = vmatprep.subr.mxu0 0.0
    %1365 = vmatpush1.msra.mxu0 0.0
    %1366 = vmatprep.subr.mxu0 0.0
    %1367 = vmatpush1.msra.mxu0 0.0
    %1368 = vmatprep.subr.mxu0 0.0
    %1369 = vmatpush1.msra.mxu0 0.0
    %1370 = vmatprep.subr.mxu0 0.0
    %1371 = vmatpush1.msra.mxu0 0.0
    %1372 = vmatprep.subr.mxu0 0.0
    %1373 = vmatpush1.msra.mxu0 0.0
    %1374 = vmatprep.subr.mxu0 0.0
    %1375 = vmatpush1.msra.mxu0 0.0
    %1376 = vmatprep.subr.mxu0 0.0
    %1377 = vmatpush1.msra.mxu0 0.0
    %1378 = vmatprep.subr.mxu0 0.0
    %1379 = vmatpush1.msra.mxu0 0.0
    %1380 = vmatprep.subr.mxu0 0.0
    %1381 = vmatpush1.msra.mxu0 0.0
    %1382 = vmatprep.subr.mxu0 0.0
    %1383 = vmatpush1.msra.mxu0 0.0
    %1384 = vmatprep.subr.mxu0 0.0
    %1385 = vmatpush1.msra.mxu0 0.0
    %1386 = vmatprep.subr.mxu0 0.0
    %1387 = vmatpush1.msra.mxu0 0.0
    %1388 = vmatprep.subr.mxu0 0.0
    %1389 = vmatpush1.msra.mxu0 0.0
    %1390 = vmatprep.subr.mxu0 0.0
    %1391 = vmatpush1.msra.mxu0 0.0
    %1392 = vmatprep.subr.mxu0 0.0
    %1393 = vmatpush1.msra.mxu0 0.0
    %1394 = vmatprep.subr.mxu0 0.0
    %1395 = vmatpush1.msra.mxu0 0.0
    %1396 = vmatprep.subr.mxu0 0.0
    %1397 = vmatpush1.msra.mxu0 0.0
    %1398 = vmatprep.subr.mxu0 0.0
    %1399 = vmatpush1.msra.mxu0 0.0
    %1400 = vmatprep.subr.mxu0 0.0
    %1401 = vmatpush1.msra.mxu0 0.0
    %1402 = vmatprep.subr.mxu0 0.0
    %1403 = vmatpush1.msra.mxu0 0.0
    %1404 = vmatprep.subr.mxu0 0.0
    %1405 = vmatpush1.msra.mxu0 0.0
    %1406 = vmatprep.subr.mxu0 0.0
    %1407 = vmatpush1.msra.mxu0 0.0
    %1408 = vmatprep.subr.mxu0 0.0
    %1409 = vmatpush1.msra.mxu0 0.0
    %1410 = vmatprep.subr.mxu0 0.0
    %1411 = vmatpush1.msra.mxu0 0.0
    %1412 = vmatprep.subr.mxu0 0.0
    %1413 = vmatpush1.msra.mxu0 0.0
    %1414 = vmatprep.subr.mxu0 0.0
    %1415 = vmatpush1.msra.mxu0 0.0
    %1416 = vmatprep.subr.mxu0 0.0
    %1417 = vmatpush1.msra.mxu0 0.0
    %1418 = vmatprep.subr.mxu0 0.0
    %1419 = vmatpush1.msra.mxu0 0.0
    %1420 = vmatprep.subr.mxu0 0.0
    %1421 = vmatpush1.msra.mxu0 0.0
    %1422 = vmatprep.subr.mxu0 0.0
    %1423 = vmatpush1.msra.mxu0 0.0
    %1424 = vmatprep.mubr.f32.mxu0 0.0
    %v1425 = vand.u32 %v970, 4294901760
    %1426 = vmatmul.mubr.f32.gmra.mrb[0].mxu0 %v1425
    %v1427 = vpop.f32.mrb[0].mxu0
    %v1428 = vadd.f32 %v1355, %v1427
    %v1429 = vpop.f32.mrb[0].mxu0
    %1430 = vdwg.mxu0
    %v1431 = vld [vmem:[%s5] sm:$0x1]
    %v1433 = vlaneseq
    %v1434 = vshrl.u32 %v1433, 7
    %v1435 = vsub.s32 0, %v1434
    %v1436 = vrot.slane %v1431, %v1435
    %v1438 = vadd.f32 %v1428, %v1436
    %vm1439 = vcmask 261120
    %1440 = vst.msk [vmem:[#allocation2] sm:$0xff] %vm1439, %v1438
    // Predicated region
    $region26: #{net_forward.1} parent=1 // pred_check
      _
    $region27: #{net_forward.1} parent=1 // pred_check_branch
      %1442 = sbr.rel (0) target = $region29
    $region28: #{net_forward.1} parent=1 // pred_region
      %s1444 = ssub.s32 128, 128
      %1445 = vsyncadd [#allocation3], %s1444
      %s1447 = sshll.u32 [#allocation2], 4
      %s1448 = int_to_ptr.vmem [resolvable:$true] %s1447
      %1450 = dma.vmem_to_hbm [thread:$0]  %s1448, 128, %s6, [#allocation3]
    $region29: #{net_forward.1} parent=1 // pred_fallthru
      _
    // Predicated region
    $region30: #{net_forward.1} parent=1 // pred_check
      _
    $region31: #{net_forward.1} parent=1 // pred_check_branch
      %1452 = sbr.rel (0) target = $region33
    $region32: #{net_forward.1} parent=1 // pred_region
      %1453 = dma.done [#allocation3], 128
    $region33: #{net_forward.1} parent=1 // pred_fallthru
      _
    %1454 = vsyncpa [#allocation3], 1

</llo_original>
